<compile_context>
chip_gen: v5e
topology: v5e:2x2
jax: 0.10.0
libtpu: 0.0.40
codegen_flags: <defaults>
</compile_context>

<pallas_src>
import jax
import jax.numpy as jnp
from jax.experimental import pallas as pl
from jax.experimental.pallas import tpu as pltpu


def _affine_kernel(params_ref, x_ref, z_ref):
    """z = A * x + B on one (tile_rows, lane) tile.

    params_ref : SMEM (2,) f32 -> [A, B]  (entire composed flow chain folded)
    x_ref      : VMEM (tile_rows, lane) input tile
    z_ref      : VMEM (tile_rows, lane) output tile
    """
    a = params_ref[0]
    b = params_ref[1]
    # Single FMA per element; compute in f32, store in the output dtype.
    z_ref[...] = (x_ref[...].astype(jnp.float32) * a + b).astype(z_ref.dtype)


def _lane_dense_layout(total):
    """Pick a lane-dense 2-D layout (lane, rows, pad) for `total` elements."""
    for lane in (1024, 512, 256, 128):
        if total % lane == 0:
            return lane, total // lane, 0
    lane = 512
    rows = -(-total // lane)          # cdiv
    return lane, rows, rows * lane - total


def _choose_tile_rows(rows, lane, itemsize, target_tile_bytes):
    """Row tile giving ~target_tile_bytes per stream; multiple of 8."""
    t = max(8, (target_tile_bytes // (lane * itemsize)) // 8 * 8)
    return rows if rows <= t else t   # full dim is always a legal block dim


def flow_composable_1d(x, log_a, b, *, target_tile_bytes=4 << 20):
    """x: any shape; log_a, b: (K,) per-flow affine params.

    Returns (z, total_log_dz_by_dx) with z shaped like x, matching the
    composed elementwise-affine flow reference.
    """
    orig_shape = x.shape
    total = x.size
    itemsize = jnp.dtype(x.dtype).itemsize

    # ---- scalar-side fold of the flow composition (exact for affine flows) -
    # z = (((x*a0 + b0)*a1 + b1)...)*a_{K-1} + b_{K-1}  ==  A*x + B
    a = jnp.exp(log_a.astype(jnp.float32))
    b32 = b.astype(jnp.float32)
    A = jnp.float32(1.0)
    B = jnp.float32(0.0)
    for k in range(log_a.shape[0]):   # K is tiny; trivial XLA scalar math
        A = A * a[k]
        B = B * a[k] + b32[k]
    sum_log_a = jnp.sum(log_a.astype(jnp.float32))
    params = jnp.stack([A, B])        # (2,) f32 -> SMEM

    # ---- lane-dense, ragged-safe layout ------------------------------------
    lane, rows, pad = _lane_dense_layout(total)
    x_flat = x.reshape(-1)
    if pad:
        x_flat = jnp.pad(x_flat, (0, pad))
    x2 = x_flat.reshape(rows, lane)

    tile_rows = _choose_tile_rows(rows, lane, itemsize, target_tile_bytes)
    grid = (pl.cdiv(rows, tile_rows),)

    z2 = pl.pallas_call(
        _affine_kernel,
        out_shape=jax.ShapeDtypeStruct((rows, lane), x.dtype),
        grid=grid,
        in_specs=[
            pl.BlockSpec(memory_space=pltpu.MemorySpace.SMEM),   # params (2,)
            pl.BlockSpec((tile_rows, lane), lambda i: (i, 0)),   # x tile
        ],
        out_specs=pl.BlockSpec((tile_rows, lane), lambda i: (i, 0)),
        compiler_params=pltpu.CompilerParams(
            dimension_semantics=("parallel",),
            vmem_limit_bytes=32 * 1024 * 1024,
        ),
        cost_estimate=pl.CostEstimate(
            flops=2 * total,
            transcendentals=0,
            bytes_accessed=2 * rows * lane * itemsize,
        ),
    )(params, x2)

    z = z2.reshape(-1)[:total].reshape(orig_shape)
    # Total log|dz/dx| is a per-call constant -> zero kernel HBM traffic.
    total_logdet = jnp.broadcast_to(sum_log_a, orig_shape)
    return z, total_logdet


def _reference(x, log_a, b):
    """Pure-JAX reference mirroring the PyTorch forward (sequential flows)."""
    z = x
    total = jnp.zeros_like(x, dtype=jnp.float32)
    for k in range(log_a.shape[0]):
        z = z * jnp.exp(log_a[k]) + b[k]
        total = total + log_a[k]
    return z, total


if __name__ == "__main__":
    key = jax.random.PRNGKey(0)
    k_x, k_a, k_b = jax.random.split(key, 3)

    # Small, TPU-friendly shapes: 256 samples x 128 features, 3 composed flows.
    N, D, K = 256, 128, 3
    x = jax.random.normal(k_x, (N, D), dtype=jnp.float32)
    log_a = 0.1 * jax.random.normal(k_a, (K,), dtype=jnp.float32)
    b = 0.1 * jax.random.normal(k_b, (K,), dtype=jnp.float32)

    z_ref, logdet_ref = _reference(x, log_a, b)

    # Default path: single roofline-sized tile for this small input.
    z, total_logdet = flow_composable_1d(x, log_a, b)
    jax.block_until_ready((z, total_logdet))
    assert jnp.allclose(z, z_ref, atol=1e-5, rtol=1e-5)
    assert jnp.allclose(total_logdet, logdet_ref, atol=1e-5, rtol=1e-5)

    # Multi-step grid path (tiny tiles so the grid has >1 step).
    z2, ld2 = flow_composable_1d(x, log_a, b, target_tile_bytes=64 * 1024)
    jax.block_until_ready((z2, ld2))
    assert jnp.allclose(z2, z_ref, atol=1e-5, rtol=1e-5)
    assert jnp.allclose(ld2, logdet_ref, atol=1e-5, rtol=1e-5)

    # Ragged / non-128-multiple shape (exercises lane-dense padding path).
    x_odd = jax.random.normal(k_x, (37, 5), dtype=jnp.float32)
    z3, ld3 = flow_composable_1d(x_odd, log_a, b)
    jax.block_until_ready((z3, ld3))
    z3_ref, ld3_ref = _reference(x_odd, log_a, b)
    assert jnp.allclose(z3, z3_ref, atol=1e-5, rtol=1e-5)
    assert jnp.allclose(ld3, ld3_ref, atol=1e-5, rtol=1e-5)

    print("KERNEL_OK")
</pallas_src>

<mosaic_0001>
module attributes {stable_mosaic.version = 11 : i64} {
  func.func @_affine_kernel(%arg0: i32, %arg1: memref<2xf32, #tpu.memory_space<smem>>, %arg2: memref<32x1024xf32, #tpu.memory_space<vmem>>, %arg3: memref<32x1024xf32, #tpu.memory_space<vmem>>) attributes {dimension_semantics = [#tpu.dimension_semantics<parallel>], iteration_bounds = array<i64: 1>, scalar_prefetch = 0 : i64, scratch_operands = 0 : i64, tpu.core_type = #tpu.core_type<tc>, window_params = [{transform_indices = @transform_0, window_bounds = array<i64: 2>}, {transform_indices = @transform_1, window_bounds = array<i64: 32, 1024>}, {transform_indices = @transform_2, window_bounds = array<i64: 32, 1024>}]} {
    %c0 = arith.constant 0 : index
    %0 = memref.load %arg1[%c0] : memref<2xf32, #tpu.memory_space<smem>>
    %c1 = arith.constant 1 : index
    %1 = memref.load %arg1[%c1] : memref<2xf32, #tpu.memory_space<smem>>
    %c0_0 = arith.constant 0 : index
    %c0_1 = arith.constant 0 : index
    %2 = vector.load %arg2[%c0_0, %c0_1] : memref<32x1024xf32, #tpu.memory_space<vmem>>, vector<32x1024xf32>
    %3 = vector.broadcast %0 : f32 to vector<32x1024xf32>
    %4 = arith.mulf %2, %3 : vector<32x1024xf32>
    %5 = vector.broadcast %1 : f32 to vector<32x1024xf32>
    %6 = arith.addf %4, %5 : vector<32x1024xf32>
    %c0_2 = arith.constant 0 : index
    %c0_3 = arith.constant 0 : index
    %7 = vector.load %arg3[%c0_2, %c0_3] : memref<32x1024xf32, #tpu.memory_space<vmem>>, vector<32x1024xf32>
    tpu.vector_store %arg3[%c0_2, %c0_3], %6 {strides = array<i32>} : memref<32x1024xf32, #tpu.memory_space<vmem>>, vector<32x1024xf32>,
    return
  }
  func.func @transform_0(%arg0: i32) -> i32 {
    %c0_i32 = arith.constant 0 : i32
    %c0_i32_0 = arith.constant 0 : i32
    return %c0_i32 : i32
  }
  func.func @transform_1(%arg0: i32) -> (i32, i32) {
    %c0_i32 = arith.constant 0 : i32
    %c0_i32_0 = arith.constant 0 : i32
    return %arg0, %c0_i32 : i32, i32
  }
  func.func @transform_2(%arg0: i32) -> (i32, i32) {
    %c0_i32 = arith.constant 0 : i32
    %c0_i32_0 = arith.constant 0 : i32
    return %arg0, %c0_i32 : i32, i32
  }
}

</mosaic_0001>

<llo_original>
// kernel: tpu_custom_call.1
$region0: #{tpu_custom_call.1}
  #allocation0 [shape = 'u32[]', space=smem, size = 0x4, offset = 0x4, fixed_abs, tag = 'smem constant byte address 0x4 - core index']
  #allocation1 [shape = 'u32[72,128]{1,0:T(1,128)}', space=vmem, size = 0x9000, scoped, tag = 'internal scratch']
  %s0 = inlined_call_operand.hbm [shape: f32[2], index: 0, kind: input, shape index: {}]
  %s1 = inlined_call_operand.hbm [shape: f32[32,1024], index: 1, kind: input, shape index: {}]
  %s2 = inlined_call_operand.hbm [shape: f32[32,1024], index: 2, kind: output, shape index: {}]
  %s3 = sld [smem:[#allocation0]]
  $region26: #{tpu_custom_call.1} parent=0
    _
  %s5 = ssub.s32 1, %s3
  %s6 = scalar_select 0, %s5, %s3
  $region1: #{tpu_custom_call.1} parent=0
    #allocation2 [shape = 'u8[512]{0}', space=smem, size = 0x200, scoped, tag = 'input window, operand 0, single buffered']
    #allocation3 [shape = 's32[1]{0}', space=sflag, size = 0x4, scoped, tag = 'scoped memory for tpu_custom_call.1']
    #allocation4 [shape = 's32[1]{0}', space=sflag, size = 0x4, scoped, tag = 'scoped memory for tpu_custom_call.1']
    #allocation5 [shape = 's32[1]{0}', space=sflag, size = 0x4, scoped, tag = 'scoped memory for tpu_custom_call.1']
    #allocation6 [shape = 'u8[131072]{0}', space=vmem, size = 0x20000, scoped, tag = 'input window, operand 1, single buffered']
    #allocation7 [shape = 'u8[131072]{0}', space=vmem, size = 0x20000, scoped, tag = 'output window, operand 0, single buffered']
    %7 = vsyncpa [#allocation5], 0
    %8 = vsyncpa [#allocation3], 0
    %9 = vsyncpa [#allocation4], 0
    // Predicated region
    $region2: #{tpu_custom_call.1} parent=1 // pred_check
      _
    $region3: #{tpu_custom_call.1} parent=1 // pred_check_branch
      %11 = sbr.rel (0) target = $region5
    $region4: #{tpu_custom_call.1} parent=1 // pred_region
      %13 = vsyncadd [#allocation5], 0
      %s15 = sshll.u32 %s0, 4
      %s16 = int_to_ptr.hbm [resolvable:$true] %s15
      %18 = dma.hbm_to_smem %s16, 16, [#allocation2], [#allocation5]
    $region5: #{tpu_custom_call.1} parent=1 // pred_fallthru
      _
    // Predicated region
    $region6: #{tpu_custom_call.1} parent=1 // pred_check
      _
    $region7: #{tpu_custom_call.1} parent=1 // pred_check_branch
      %20 = sbr.rel (0) target = $region9
    $region8: #{tpu_custom_call.1} parent=1 // pred_region
      %22 = vsyncadd [#allocation3], 0
      %s23 = sshll.u32 %s1, 4
      %s24 = int_to_ptr.hbm [resolvable:$true] %s23
      %s25 = sshll.u32 [#allocation6], 4
      %s26 = int_to_ptr.vmem [resolvable:$true] %s25
      %31 = dma.hbm_to_vmem [thread:$0]  %s24, 4096, %s26, [#allocation3], 1024, 1024, 64
    $region9: #{tpu_custom_call.1} parent=1 // pred_fallthru
      _
    // Predicated region
    $region10: #{tpu_custom_call.1} parent=1 // pred_check
      _
    $region11: #{tpu_custom_call.1} parent=1 // pred_check_branch
      %33 = sbr.rel (0) target = $region13
    $region12: #{tpu_custom_call.1} parent=1 // pred_region
      %35 = dma.done [#allocation5], 16
    $region13: #{tpu_custom_call.1} parent=1 // pred_fallthru
      _
    // Predicated region
    $region14: #{tpu_custom_call.1} parent=1 // pred_check
      _
    $region15: #{tpu_custom_call.1} parent=1 // pred_check_branch
      %37 = sbr.rel (0) target = $region17
    $region16: #{tpu_custom_call.1} parent=1 // pred_region
      %39 = dma.done [#allocation3], 4096
    $region17: #{tpu_custom_call.1} parent=1 // pred_fallthru
      _
    %40 = sfence
    %s41 = sld [smem:[#allocation2]]
    %s42 = sld [smem:[#allocation2 + $0x1]]
    %v43 = vld [vmem:[#allocation6] sm:$0xff]
    %v44 = vld [vmem:[#allocation6 + $0x8] sm:$0xff]
    %v45 = vld [vmem:[#allocation6 + $0x10] sm:$0xff]
    %v46 = vld [vmem:[#allocation6 + $0x18] sm:$0xff]
    %v47 = vld [vmem:[#allocation6 + $0x20] sm:$0xff]
    %v48 = vld [vmem:[#allocation6 + $0x28] sm:$0xff]
    %v49 = vld [vmem:[#allocation6 + $0x30] sm:$0xff]
    %v50 = vld [vmem:[#allocation6 + $0x38] sm:$0xff]
    %v51 = vld [vmem:[#allocation6 + $0x40] sm:$0xff]
    %v52 = vld [vmem:[#allocation6 + $0x48] sm:$0xff]
    %v53 = vld [vmem:[#allocation6 + $0x50] sm:$0xff]
    %v54 = vld [vmem:[#allocation6 + $0x58] sm:$0xff]
    %v55 = vld [vmem:[#allocation6 + $0x60] sm:$0xff]
    %v56 = vld [vmem:[#allocation6 + $0x68] sm:$0xff]
    %v57 = vld [vmem:[#allocation6 + $0x70] sm:$0xff]
    %v58 = vld [vmem:[#allocation6 + $0x78] sm:$0xff]
    %v59 = vld [vmem:[#allocation6 + $0x80] sm:$0xff]
    %v60 = vld [vmem:[#allocation6 + $0x88] sm:$0xff]
    %v61 = vld [vmem:[#allocation6 + $0x90] sm:$0xff]
    %v62 = vld [vmem:[#allocation6 + $0x98] sm:$0xff]
    %v63 = vld [vmem:[#allocation6 + $0xa0] sm:$0xff]
    %v64 = vld [vmem:[#allocation6 + $0xa8] sm:$0xff]
    %v65 = vld [vmem:[#allocation6 + $0xb0] sm:$0xff]
    %v66 = vld [vmem:[#allocation6 + $0xb8] sm:$0xff]
    %v67 = vld [vmem:[#allocation6 + $0xc0] sm:$0xff]
    %v68 = vld [vmem:[#allocation6 + $0xc8] sm:$0xff]
    %v69 = vld [vmem:[#allocation6 + $0xd0] sm:$0xff]
    %v70 = vld [vmem:[#allocation6 + $0xd8] sm:$0xff]
    %v71 = vld [vmem:[#allocation6 + $0xe0] sm:$0xff]
    %v72 = vld [vmem:[#allocation6 + $0xe8] sm:$0xff]
    %v73 = vld [vmem:[#allocation6 + $0xf0] sm:$0xff]
    %v74 = vld [vmem:[#allocation6 + $0xf8] sm:$0xff]
    %v75 = vstv %s41
    %v76 = vmul.f32 %v43, %v75
    %v77 = vmul.f32 %v44, %v75
    %v78 = vmul.f32 %v45, %v75
    %v79 = vmul.f32 %v46, %v75
    %v80 = vmul.f32 %v47, %v75
    %v81 = vmul.f32 %v48, %v75
    %v82 = vmul.f32 %v49, %v75
    %v83 = vmul.f32 %v50, %v75
    %v84 = vmul.f32 %v51, %v75
    %v85 = vmul.f32 %v52, %v75
    %v86 = vmul.f32 %v53, %v75
    %v87 = vmul.f32 %v54, %v75
    %v88 = vmul.f32 %v55, %v75
    %v89 = vmul.f32 %v56, %v75
    %v90 = vmul.f32 %v57, %v75
    %v91 = vmul.f32 %v58, %v75
    %v92 = vmul.f32 %v59, %v75
    %v93 = vmul.f32 %v60, %v75
    %v94 = vmul.f32 %v61, %v75
    %v95 = vmul.f32 %v62, %v75
    %v96 = vmul.f32 %v63, %v75
    %v97 = vmul.f32 %v64, %v75
    %v98 = vmul.f32 %v65, %v75
    %v99 = vmul.f32 %v66, %v75
    %v100 = vmul.f32 %v67, %v75
    %v101 = vmul.f32 %v68, %v75
    %v102 = vmul.f32 %v69, %v75
    %v103 = vmul.f32 %v70, %v75
    %v104 = vmul.f32 %v71, %v75
    %v105 = vmul.f32 %v72, %v75
    %v106 = vmul.f32 %v73, %v75
    %v107 = vmul.f32 %v74, %v75
    %v108 = vstv %s42
    %v109 = vadd.f32 %v76, %v108
    %v110 = vadd.f32 %v77, %v108
    %v111 = vadd.f32 %v78, %v108
    %v112 = vadd.f32 %v79, %v108
    %v113 = vadd.f32 %v80, %v108
    %v114 = vadd.f32 %v81, %v108
    %v115 = vadd.f32 %v82, %v108
    %v116 = vadd.f32 %v83, %v108
    %v117 = vadd.f32 %v84, %v108
    %v118 = vadd.f32 %v85, %v108
    %v119 = vadd.f32 %v86, %v108
    %v120 = vadd.f32 %v87, %v108
    %v121 = vadd.f32 %v88, %v108
    %v122 = vadd.f32 %v89, %v108
    %v123 = vadd.f32 %v90, %v108
    %v124 = vadd.f32 %v91, %v108
    %v125 = vadd.f32 %v92, %v108
    %v126 = vadd.f32 %v93, %v108
    %v127 = vadd.f32 %v94, %v108
    %v128 = vadd.f32 %v95, %v108
    %v129 = vadd.f32 %v96, %v108
    %v130 = vadd.f32 %v97, %v108
    %v131 = vadd.f32 %v98, %v108
    %v132 = vadd.f32 %v99, %v108
    %v133 = vadd.f32 %v100, %v108
    %v134 = vadd.f32 %v101, %v108
    %v135 = vadd.f32 %v102, %v108
    %v136 = vadd.f32 %v103, %v108
    %v137 = vadd.f32 %v104, %v108
    %v138 = vadd.f32 %v105, %v108
    %v139 = vadd.f32 %v106, %v108
    %v140 = vadd.f32 %v107, %v108
    %141 = vst [vmem:[#allocation7] sm:$0xff] %v109
    %142 = vst [vmem:[#allocation7 + $0x8] sm:$0xff] %v110
    %143 = vst [vmem:[#allocation7 + $0x10] sm:$0xff] %v111
    %144 = vst [vmem:[#allocation7 + $0x18] sm:$0xff] %v112
    %145 = vst [vmem:[#allocation7 + $0x20] sm:$0xff] %v113
    %146 = vst [vmem:[#allocation7 + $0x28] sm:$0xff] %v114
    %147 = vst [vmem:[#allocation7 + $0x30] sm:$0xff] %v115
    %148 = vst [vmem:[#allocation7 + $0x38] sm:$0xff] %v116
    %149 = vst [vmem:[#allocation7 + $0x40] sm:$0xff] %v117
    %150 = vst [vmem:[#allocation7 + $0x48] sm:$0xff] %v118
    %151 = vst [vmem:[#allocation7 + $0x50] sm:$0xff] %v119
    %152 = vst [vmem:[#allocation7 + $0x58] sm:$0xff] %v120
    %153 = vst [vmem:[#allocation7 + $0x60] sm:$0xff] %v121
    %154 = vst [vmem:[#allocation7 + $0x68] sm:$0xff] %v122
    %155 = vst [vmem:[#allocation7 + $0x70] sm:$0xff] %v123
    %156 = vst [vmem:[#allocation7 + $0x78] sm:$0xff] %v124
    %157 = vst [vmem:[#allocation7 + $0x80] sm:$0xff] %v125
    %158 = vst [vmem:[#allocation7 + $0x88] sm:$0xff] %v126
    %159 = vst [vmem:[#allocation7 + $0x90] sm:$0xff] %v127
    %160 = vst [vmem:[#allocation7 + $0x98] sm:$0xff] %v128
    %161 = vst [vmem:[#allocation7 + $0xa0] sm:$0xff] %v129
    %162 = vst [vmem:[#allocation7 + $0xa8] sm:$0xff] %v130
    %163 = vst [vmem:[#allocation7 + $0xb0] sm:$0xff] %v131
    %164 = vst [vmem:[#allocation7 + $0xb8] sm:$0xff] %v132
    %165 = vst [vmem:[#allocation7 + $0xc0] sm:$0xff] %v133
    %166 = vst [vmem:[#allocation7 + $0xc8] sm:$0xff] %v134
    %167 = vst [vmem:[#allocation7 + $0xd0] sm:$0xff] %v135
    %168 = vst [vmem:[#allocation7 + $0xd8] sm:$0xff] %v136
    %169 = vst [vmem:[#allocation7 + $0xe0] sm:$0xff] %v137
    %170 = vst [vmem:[#allocation7 + $0xe8] sm:$0xff] %v138
    %171 = vst [vmem:[#allocation7 + $0xf0] sm:$0xff] %v139
    %172 = vst [vmem:[#allocation7 + $0xf8] sm:$0xff] %v140
    // Predicated region
    $region18: #{tpu_custom_call.1} parent=1 // pred_check
      _
    $region19: #{tpu_custom_call.1} parent=1 // pred_check_branch
      %174 = sbr.rel (0) target = $region21
    $region20: #{tpu_custom_call.1} parent=1 // pred_region
      %176 = vsyncadd [#allocation4], 0
      %s177 = sshll.u32 [#allocation7], 4
      %s178 = int_to_ptr.vmem [resolvable:$true] %s177
      %s179 = sshll.u32 %s2, 4
      %s180 = int_to_ptr.hbm [resolvable:$true] %s179
      %185 = dma.vmem_to_hbm [thread:$0]  %s178, 4096, %s180, [#allocation4], 1024, 1024, 64
    $region21: #{tpu_custom_call.1} parent=1 // pred_fallthru
      _
    // Predicated region
    $region22: #{tpu_custom_call.1} parent=1 // pred_check
      _
    $region23: #{tpu_custom_call.1} parent=1 // pred_check_branch
      %187 = sbr.rel (0) target = $region25
    $region24: #{tpu_custom_call.1} parent=1 // pred_region
      %189 = dma.done [#allocation4], 4096
    $region25: #{tpu_custom_call.1} parent=1 // pred_fallthru
      _
    %190 = vsyncpa [#allocation3], 1
    %191 = vsyncpa [#allocation4], 1
    %192 = vsyncpa [#allocation5], 1

</llo_original>
